<compile_context>
chip_gen: v5e
topology: v5e:2x2
jax: 0.10.0
libtpu: 0.0.40
codegen_flags: <defaults>
</compile_context>

<pallas_src>
import functools

import jax
import jax.numpy as jnp
from jax.experimental import pallas as pl
from jax.experimental.pallas import tpu as pltpu


def _round_up(a, b):
    return pl.cdiv(a, b) * b


def _nugget_kernel(x_ref, w_ref, gb_ref, o_ref,
                   sum_ref, sq_ref, scale_ref, shift_ref, y_ref, *,
                   m_total, tile_m, eps, resident_y):
    """Fused conv-matmul + batch stats (phase 0) and BN-affine + ReLU (phase 1)."""
    phase = pl.program_id(0)
    i = pl.program_id(1)
    last = pl.num_programs(1) - 1

    @pl.when((phase == 0) & (i == 0))
    def _init():
        sum_ref[...] = jnp.zeros_like(sum_ref)
        sq_ref[...] = jnp.zeros_like(sq_ref)
        # The output block index is pinned to 0 for all of phase 0; give it defined
        # contents so an early writeback (pipeline-semantics change) could never leak
        # uninitialized VMEM. Phase 1 step 0 fully overwrites it.
        o_ref[...] = jnp.zeros_like(o_ref)

    if resident_y:
        # Single matmul pass: y stays resident in VMEM, phase 1 is a pure epilogue.
        @pl.when(phase == 0)
        def _phase0():
            y = jnp.dot(x_ref[...], w_ref[...], preferred_element_type=jnp.float32)
            # Zero-padded rows of x2d give all-zero y rows -> contribute nothing to the
            # sums, so no row mask is needed (only 1/m_total must use the true count).
            sum_ref[...] += jnp.sum(y, axis=0, keepdims=True)
            sq_ref[...] += jnp.sum(y * y, axis=0, keepdims=True)
            off = pl.multiple_of(i * tile_m, tile_m)
            y_ref[pl.ds(off, tile_m), :] = y
    else:
        # Fallback: y too big for VMEM -> recompute the (cheap-K) matmul in phase 1.
        y_stream = jnp.dot(x_ref[...], w_ref[...], preferred_element_type=jnp.float32)

        @pl.when(phase == 0)
        def _phase0():
            sum_ref[...] += jnp.sum(y_stream, axis=0, keepdims=True)
            sq_ref[...] += jnp.sum(y_stream * y_stream, axis=0, keepdims=True)

    @pl.when((phase == 0) & (i == last))
    def _finalize():
        inv_m = 1.0 / m_total
        mean = sum_ref[...] * inv_m
        # E[y^2] - mean^2 can go slightly negative in f32; clamp before rsqrt.
        var = jnp.maximum(sq_ref[...] * inv_m - mean * mean, 0.0)
        scale = gb_ref[0:1, :] * jax.lax.rsqrt(var + eps)
        scale_ref[...] = scale
        shift_ref[...] = gb_ref[1:2, :] - mean * scale

    @pl.when(phase == 1)
    def _apply():
        if resident_y:
            off = pl.multiple_of(i * tile_m, tile_m)
            y = y_ref[pl.ds(off, tile_m), :]
        else:
            y = y_stream
        o_ref[...] = jnp.maximum(y * scale_ref[...] + shift_ref[...], 0.0)


def nugget_forward(x, conv_w, conv_b, gamma, beta, *, eps=1e-5, tile_m=1024,
                   compute_dtype=jnp.bfloat16):
    """x: (N, C_in, H, W) NCHW; conv_w: (C_out, C_in, K, K); conv_b/gamma/beta: (C_out,)."""
    del conv_b  # Cancels exactly under training-mode BatchNorm (batch-mean subtraction).

    N, C_in, H, W = x.shape
    C_out, _, K, _ = conv_w.shape
    OH, OW = H - K + 1, W - K + 1

    ck = C_in * K * K
    m_total = N * OH * OW
    CP = max(128, _round_up(C_out, 128))           # lane-padded channel width
    in_bytes = jnp.dtype(compute_dtype).itemsize
    ALIGN = 16                                     # sublane-safe tile alignment (bf16)

    # ---- glue: transpose-free, tap-last im2col from an NHWC view ----
    # col index = (dh*K + dw)*C_in + ci ; the only transpose is on the raw input
    # (NCHW -> NHWC), never on the K*K-expanded tensor.
    x_nhwc = jnp.transpose(x, (0, 2, 3, 1))                    # (N, H, W, C_in)
    cols = [x_nhwc[:, dh:dh + OH, dw:dw + OW, :]
            for dh in range(K) for dw in range(K)]
    x2d = jnp.concatenate(cols, axis=-1).reshape(m_total, ck).astype(compute_dtype)

    # Weights in matching (dh, dw, ci) order; lane-pad C_out -> CP.
    w2d = conv_w.transpose(2, 3, 1, 0).reshape(ck, C_out).astype(compute_dtype)
    w2d = jnp.pad(w2d, ((0, 0), (0, CP - C_out)))
    gb = jnp.zeros((2, CP), jnp.float32)
    gb = gb.at[0, :C_out].set(gamma.astype(jnp.float32))
    gb = gb.at[1, :C_out].set(beta.astype(jnp.float32))

    # ---- tiling & VMEM budget (accounts for 128-lane padding of the ck minor dim) ----
    ck_lanes = _round_up(ck, 128)

    def _stream_bytes(tm):
        x_buf = 2 * tm * ck_lanes * in_bytes        # double-buffered input tile
        o_buf = 2 * tm * CP * 4                     # double-buffered output tile
        w_buf = 2 * _round_up(ck, ALIGN) * CP * in_bytes
        misc = 8 * CP * 4 + 2 * CP * 4
        return x_buf + o_buf + w_buf + misc

    tile_m = max(ALIGN, min(_round_up(tile_m, ALIGN), _round_up(m_total, ALIGN)))
    STREAM_BUDGET = 20 << 20                        # conservative for v7x's 64 MiB VMEM
    while tile_m > ALIGN and _stream_bytes(tile_m) > STREAM_BUDGET:
        tile_m = max(ALIGN, (tile_m // 2 // ALIGN) * ALIGN)

    m_pad = _round_up(m_total, tile_m)
    n_tiles = m_pad // tile_m
    x2d = jnp.pad(x2d, ((0, m_pad - m_total), (0, 0)))

    # Keep un-normalized y resident in VMEM (single matmul pass) when it fits.
    y_bytes = m_pad * CP * 4
    RESIDENT_BUDGET = 24 << 20
    resident_y = y_bytes <= RESIDENT_BUDGET
    y_scratch_shape = (m_pad, CP) if resident_y else (ALIGN, CP)

    vmem_need = _stream_bytes(tile_m) + (y_bytes if resident_y else ALIGN * CP * 4)
    vmem_limit = int(min(max(vmem_need + (2 << 20), 16 << 20), 48 << 20))

    if resident_y:
        x_index = lambda p, i: (i * (1 - p), 0)     # phase 1 pins block 0: x read once
    else:
        x_index = lambda p, i: (i, 0)               # phase 1 re-streams + recomputes

    matmul_passes = 1 if resident_y else 2
    cost = pl.CostEstimate(
        flops=2 * matmul_passes * m_pad * ck * CP + 5 * m_pad * CP,
        transcendentals=CP,
        bytes_accessed=(matmul_passes * m_pad * ck * in_bytes
                        + ck * CP * in_bytes + 2 * CP * 4 + m_pad * CP * 4))

    kernel = functools.partial(_nugget_kernel, m_total=m_total, tile_m=tile_m,
                               eps=eps, resident_y=resident_y)

    out2d = pl.pallas_call(
        kernel,
        out_shape=jax.ShapeDtypeStruct((m_pad, CP), jnp.float32),
        grid_spec=pltpu.PrefetchScalarGridSpec(
            num_scalar_prefetch=0,
            grid=(2, n_tiles),                      # (phase, row tile)
            in_specs=[
                pl.BlockSpec((tile_m, ck), x_index),
                pl.BlockSpec((ck, CP), lambda p, i: (0, 0)),
                pl.BlockSpec((2, CP), lambda p, i: (0, 0)),
            ],
            # Phase 0 pins the output to block 0 (only touched by the defensive init),
            # phase 1 streams lane-dense CP-wide tiles with unmasked stores.
            out_specs=pl.BlockSpec((tile_m, CP), lambda p, i: (i * p, 0)),
            scratch_shapes=[
                pltpu.VMEM((1, CP), jnp.float32),   # sum(y)
                pltpu.VMEM((1, CP), jnp.float32),   # sum(y*y)
                pltpu.VMEM((1, CP), jnp.float32),   # BN scale
                pltpu.VMEM((1, CP), jnp.float32),   # BN shift
                pltpu.VMEM(y_scratch_shape, jnp.float32),  # resident y (or dummy)
            ],
        ),
        # Stats accumulate serially across tiles and the phase axis must be ordered.
        compiler_params=pltpu.CompilerParams(
            dimension_semantics=("arbitrary", "arbitrary"),
            vmem_limit_bytes=vmem_limit),
        cost_estimate=cost,
    )(x2d, w2d, gb)

    # ---- glue: drop row/lane padding, back to NCHW ----
    out = out2d[:m_total, :C_out].reshape(N, OH, OW, C_out).transpose(0, 3, 1, 2)
    # TODO(synk): BatchNorm2d running_mean/running_var buffer updates are module state,
    # not forward outputs; skipped.
    return out


def nugget_reference(x, conv_w, conv_b, gamma, beta, eps=1e-5):
    y = jax.lax.conv_general_dilated(
        x, conv_w, (1, 1), 'VALID',
        dimension_numbers=('NCHW', 'OIHW', 'NCHW'),
        precision=jax.lax.Precision.HIGHEST) + conv_b.reshape(1, -1, 1, 1)
    mean = y.mean(axis=(0, 2, 3), keepdims=True)
    var = y.var(axis=(0, 2, 3), keepdims=True)  # biased, matches BN training forward
    yn = (y - mean) / jnp.sqrt(var + eps)
    return jnp.maximum(yn * gamma.reshape(1, -1, 1, 1) + beta.reshape(1, -1, 1, 1), 0.0)


if __name__ == "__main__":
    N, C_in, C_out, H, W, K = 2, 4, 8, 16, 16, 3

    key = jax.random.PRNGKey(0)
    kx, kw, kb, kg, kbeta = jax.random.split(key, 5)
    x = jax.random.normal(kx, (N, C_in, H, W), dtype=jnp.float32)
    conv_w = 0.1 * jax.random.normal(kw, (C_out, C_in, K, K), dtype=jnp.float32)
    conv_b = 0.1 * jax.random.normal(kb, (C_out,), dtype=jnp.float32)
    gamma = 1.0 + 0.1 * jax.random.normal(kg, (C_out,), dtype=jnp.float32)
    beta = 0.1 * jax.random.normal(kbeta, (C_out,), dtype=jnp.float32)

    ref = nugget_reference(x, conv_w, conv_b, gamma, beta)

    # f32 compute path: tight check of the fused kernel semantics.
    out_f32 = jax.block_until_ready(
        nugget_forward(x, conv_w, conv_b, gamma, beta, compute_dtype=jnp.float32))
    assert out_f32.shape == (N, C_out, H - K + 1, W - K + 1)
    assert jnp.allclose(out_f32, ref, rtol=1e-3, atol=1e-3), "f32 mismatch vs reference"

    # bf16 compute path (default, HBM-byte-optimized): f32 accumulation, looser tol.
    out_bf16 = jax.block_until_ready(nugget_forward(x, conv_w, conv_b, gamma, beta))
    assert out_bf16.shape == (N, C_out, H - K + 1, W - K + 1)
    assert jnp.allclose(out_bf16, ref, rtol=2e-2, atol=2e-2), "bf16 mismatch vs reference"

    print("KERNEL_OK")
</pallas_src>

<mosaic_0001>
module attributes {stable_mosaic.version = 11 : i64} {
  func.func @_nugget_kernel(%arg0: i32, %arg1: i32, %arg2: memref<400x36xf32, #tpu.memory_space<vmem>>, %arg3: memref<36x128xf32, #tpu.memory_space<vmem>>, %arg4: memref<2x128xf32, #tpu.memory_space<vmem>>, %arg5: memref<400x128xf32, #tpu.memory_space<vmem>>, %arg6: memref<1x128xf32, #tpu.memory_space<vmem>>, %arg7: memref<1x128xf32, #tpu.memory_space<vmem>>, %arg8: memref<1x128xf32, #tpu.memory_space<vmem>>, %arg9: memref<1x128xf32, #tpu.memory_space<vmem>>, %arg10: memref<400x128xf32, #tpu.memory_space<vmem>>) attributes {dimension_semantics = [#tpu.dimension_semantics<arbitrary>, #tpu.dimension_semantics<arbitrary>], iteration_bounds = array<i64: 2, 1>, scalar_prefetch = 0 : i64, scratch_operands = 5 : i64, tpu.core_type = #tpu.core_type<tc>, window_params = [{transform_indices = @transform_0, window_bounds = array<i64: 400, 36>}, {pipeline_mode = #tpu.pipeline_mode<synchronous>, transform_indices = @transform_1, window_bounds = array<i64: 36, 128>}, {pipeline_mode = #tpu.pipeline_mode<synchronous>, transform_indices = @transform_2, window_bounds = array<i64: 2, 128>}, {transform_indices = @transform_3, window_bounds = array<i64: 400, 128>}]} {
    %c0_i32 = arith.constant 0 : i32
    %0 = arith.cmpi eq, %arg0, %c0_i32 : i32
    %c0_i32_0 = arith.constant 0 : i32
    %1 = arith.cmpi eq, %arg1, %c0_i32_0 : i32
    %2 = arith.andi %0, %1 : i1
    %3 = arith.extui %2 : i1 to i32
    %c0_i32_1 = arith.constant 0 : i32
    %4 = arith.cmpi ne, %3, %c0_i32_1 : i32
    scf.if %4 {
      %cst = arith.constant 0.000000e+00 : f32
      %16 = vector.broadcast %cst : f32 to vector<1x128xf32>
      %c0 = arith.constant 0 : index
      %c0_8 = arith.constant 0 : index
      %17 = vector.load %arg6[%c0, %c0_8] : memref<1x128xf32, #tpu.memory_space<vmem>>, vector<1x128xf32>
      tpu.vector_store %arg6[%c0, %c0_8], %16 {strides = array<i32>} : memref<1x128xf32, #tpu.memory_space<vmem>>, vector<1x128xf32>,
      %cst_9 = arith.constant 0.000000e+00 : f32
      %18 = vector.broadcast %cst_9 : f32 to vector<1x128xf32>
      %c0_10 = arith.constant 0 : index
      %c0_11 = arith.constant 0 : index
      %19 = vector.load %arg7[%c0_10, %c0_11] : memref<1x128xf32, #tpu.memory_space<vmem>>, vector<1x128xf32>
      tpu.vector_store %arg7[%c0_10, %c0_11], %18 {strides = array<i32>} : memref<1x128xf32, #tpu.memory_space<vmem>>, vector<1x128xf32>,
      %cst_12 = arith.constant 0.000000e+00 : f32
      %20 = vector.broadcast %cst_12 : f32 to vector<400x128xf32>
      %c0_13 = arith.constant 0 : index
      %c0_14 = arith.constant 0 : index
      %21 = vector.load %arg5[%c0_13, %c0_14] : memref<400x128xf32, #tpu.memory_space<vmem>>, vector<400x128xf32>
      tpu.vector_store %arg5[%c0_13, %c0_14], %20 {strides = array<i32>} : memref<400x128xf32, #tpu.memory_space<vmem>>, vector<400x128xf32>,
    } else {
    }
    %c0_i32_2 = arith.constant 0 : i32
    %5 = arith.cmpi eq, %arg0, %c0_i32_2 : i32
    %6 = arith.extui %5 : i1 to i32
    %c0_i32_3 = arith.constant 0 : i32
    %7 = arith.cmpi ne, %6, %c0_i32_3 : i32
    scf.if %7 {
      %c0 = arith.constant 0 : index
      %c0_8 = arith.constant 0 : index
      %16 = vector.load %arg2[%c0, %c0_8] : memref<400x36xf32, #tpu.memory_space<vmem>>, vector<400x36xf32>
      %c0_9 = arith.constant 0 : index
      %c0_10 = arith.constant 0 : index
      %17 = vector.load %arg3[%c0_9, %c0_10] : memref<36x128xf32, #tpu.memory_space<vmem>>, vector<36x128xf32>
      %cst = arith.constant dense<0.000000e+00> : vector<400x128xf32>
      %18 = tpu.matmul %16, %17, %cst {dimension_numbers = #tpu.dot_dimension_numbers<[1], [0], [0], [1], [0, 0, 1, 1], [], []>} : vector<400x36xf32>, vector<36x128xf32>, vector<400x128xf32> -> vector<400x128xf32>
      %c0_11 = arith.constant 0 : index
      %c0_12 = arith.constant 0 : index
      %19 = vector.load %arg6[%c0_11, %c0_12] : memref<1x128xf32, #tpu.memory_space<vmem>>, vector<1x128xf32>
      %cst_13 = arith.constant dense<0.000000e+00> : vector<128xf32>
      %20 = vector.multi_reduction <add>, %18, %cst_13 [0] : vector<400x128xf32> to vector<128xf32>
      %21 = vector.shape_cast %20 : vector<128xf32> to vector<1x128xf32>
      %22 = arith.addf %19, %21 : vector<1x128xf32>
      %c0_14 = arith.constant 0 : index
      %c0_15 = arith.constant 0 : index
      %23 = vector.load %arg6[%c0_14, %c0_15] : memref<1x128xf32, #tpu.memory_space<vmem>>, vector<1x128xf32>
      tpu.vector_store %arg6[%c0_14, %c0_15], %22 {strides = array<i32>} : memref<1x128xf32, #tpu.memory_space<vmem>>, vector<1x128xf32>,
      %c0_16 = arith.constant 0 : index
      %c0_17 = arith.constant 0 : index
      %24 = vector.load %arg7[%c0_16, %c0_17] : memref<1x128xf32, #tpu.memory_space<vmem>>, vector<1x128xf32>
      %25 = arith.mulf %18, %18 : vector<400x128xf32>
      %cst_18 = arith.constant dense<0.000000e+00> : vector<128xf32>
      %26 = vector.multi_reduction <add>, %25, %cst_18 [0] : vector<400x128xf32> to vector<128xf32>
      %27 = vector.shape_cast %26 : vector<128xf32> to vector<1x128xf32>
      %28 = arith.addf %24, %27 : vector<1x128xf32>
      %c0_19 = arith.constant 0 : index
      %c0_20 = arith.constant 0 : index
      %29 = vector.load %arg7[%c0_19, %c0_20] : memref<1x128xf32, #tpu.memory_space<vmem>>, vector<1x128xf32>
      tpu.vector_store %arg7[%c0_19, %c0_20], %28 {strides = array<i32>} : memref<1x128xf32, #tpu.memory_space<vmem>>, vector<1x128xf32>,
      %c400_i32 = arith.constant 400 : i32
      %30 = arith.muli %arg1, %c400_i32 : i32
      %31 = tpu.assume_multiple %30, 400 : i32
      %32 = arith.index_cast %31 : i32 to index
      %c0_21 = arith.constant 0 : index
      %33 = vector.load %arg10[%32, %c0_21] : memref<400x128xf32, #tpu.memory_space<vmem>>, vector<400x128xf32>
      tpu.vector_store %arg10[%32, %c0_21], %18 {strides = array<i32>} : memref<400x128xf32, #tpu.memory_space<vmem>>, vector<400x128xf32>,
    } else {
    }
    %c0_i32_4 = arith.constant 0 : i32
    %8 = arith.cmpi eq, %arg0, %c0_i32_4 : i32
    %c0_i32_5 = arith.constant 0 : i32
    %9 = arith.cmpi eq, %arg1, %c0_i32_5 : i32
    %10 = arith.andi %8, %9 : i1
    %11 = arith.extui %10 : i1 to i32
    %c0_i32_6 = arith.constant 0 : i32
    %12 = arith.cmpi ne, %11, %c0_i32_6 : i32
    scf.if %12 {
      %c0 = arith.constant 0 : index
      %c0_8 = arith.constant 0 : index
      %16 = vector.load %arg6[%c0, %c0_8] : memref<1x128xf32, #tpu.memory_space<vmem>>, vector<1x128xf32>
      %cst = arith.constant 0.00255102036 : f32
      %17 = vector.broadcast %cst : f32 to vector<1x128xf32>
      %18 = arith.mulf %16, %17 : vector<1x128xf32>
      %c0_9 = arith.constant 0 : index
      %c0_10 = arith.constant 0 : index
      %19 = vector.load %arg7[%c0_9, %c0_10] : memref<1x128xf32, #tpu.memory_space<vmem>>, vector<1x128xf32>
      %cst_11 = arith.constant 0.00255102036 : f32
      %20 = vector.broadcast %cst_11 : f32 to vector<1x128xf32>
      %21 = arith.mulf %19, %20 : vector<1x128xf32>
      %22 = arith.mulf %18, %18 : vector<1x128xf32>
      %23 = arith.subf %21, %22 : vector<1x128xf32>
      %cst_12 = arith.constant 0.000000e+00 : f32
      %24 = vector.broadcast %cst_12 : f32 to vector<1x128xf32>
      %25 = arith.maximumf %23, %24 : vector<1x128xf32>
      %c0_13 = arith.constant 0 : index
      %c0_14 = arith.constant 0 : index
      %26 = vector.load %arg4[%c0_13, %c0_14] : memref<2x128xf32, #tpu.memory_space<vmem>>, vector<1x128xf32>
      %cst_15 = arith.constant 9.99999974E-6 : f32
      %27 = vector.broadcast %cst_15 : f32 to vector<1x128xf32>
      %28 = arith.addf %25, %27 : vector<1x128xf32>
      %29 = math.rsqrt %28 : vector<1x128xf32>
      %30 = arith.mulf %26, %29 : vector<1x128xf32>
      %c0_16 = arith.constant 0 : index
      %c0_17 = arith.constant 0 : index
      %31 = vector.load %arg8[%c0_16, %c0_17] : memref<1x128xf32, #tpu.memory_space<vmem>>, vector<1x128xf32>
      tpu.vector_store %arg8[%c0_16, %c0_17], %30 {strides = array<i32>} : memref<1x128xf32, #tpu.memory_space<vmem>>, vector<1x128xf32>,
      %c1 = arith.constant 1 : index
      %c0_18 = arith.constant 0 : index
      %32 = vector.load %arg4[%c1, %c0_18] : memref<2x128xf32, #tpu.memory_space<vmem>>, vector<1x128xf32>
      %33 = arith.mulf %18, %30 : vector<1x128xf32>
      %34 = arith.subf %32, %33 : vector<1x128xf32>
      %c0_19 = arith.constant 0 : index
      %c0_20 = arith.constant 0 : index
      %35 = vector.load %arg9[%c0_19, %c0_20] : memref<1x128xf32, #tpu.memory_space<vmem>>, vector<1x128xf32>
      tpu.vector_store %arg9[%c0_19, %c0_20], %34 {strides = array<i32>} : memref<1x128xf32, #tpu.memory_space<vmem>>, vector<1x128xf32>,
    } else {
    }
    %c1_i32 = arith.constant 1 : i32
    %13 = arith.cmpi eq, %arg0, %c1_i32 : i32
    %14 = arith.extui %13 : i1 to i32
    %c0_i32_7 = arith.constant 0 : i32
    %15 = arith.cmpi ne, %14, %c0_i32_7 : i32
    scf.if %15 {
      %c400_i32 = arith.constant 400 : i32
      %16 = arith.muli %arg1, %c400_i32 : i32
      %17 = tpu.assume_multiple %16, 400 : i32
      %18 = arith.index_cast %17 : i32 to index
      %c0 = arith.constant 0 : index
      %19 = vector.load %arg10[%18, %c0] : memref<400x128xf32, #tpu.memory_space<vmem>>, vector<400x128xf32>
      %c0_8 = arith.constant 0 : index
      %c0_9 = arith.constant 0 : index
      %20 = vector.load %arg8[%c0_8, %c0_9] : memref<1x128xf32, #tpu.memory_space<vmem>>, vector<1x128xf32>
      %21 = vector.broadcast %20 : vector<1x128xf32> to vector<400x128xf32>
      %22 = arith.mulf %19, %21 : vector<400x128xf32>
      %c0_10 = arith.constant 0 : index
      %c0_11 = arith.constant 0 : index
      %23 = vector.load %arg9[%c0_10, %c0_11] : memref<1x128xf32, #tpu.memory_space<vmem>>, vector<1x128xf32>
      %24 = vector.broadcast %23 : vector<1x128xf32> to vector<400x128xf32>
      %25 = arith.addf %22, %24 : vector<400x128xf32>
      %cst = arith.constant 0.000000e+00 : f32
      %26 = vector.broadcast %cst : f32 to vector<400x128xf32>
      %27 = arith.maximumf %25, %26 : vector<400x128xf32>
      %c0_12 = arith.constant 0 : index
      %c0_13 = arith.constant 0 : index
      %28 = vector.load %arg5[%c0_12, %c0_13] : memref<400x128xf32, #tpu.memory_space<vmem>>, vector<400x128xf32>
      tpu.vector_store %arg5[%c0_12, %c0_13], %27 {strides = array<i32>} : memref<400x128xf32, #tpu.memory_space<vmem>>, vector<400x128xf32>,
    } else {
    }
    return
  }
  func.func @transform_0(%arg0: i32, %arg1: i32) -> (i32, i32) {
    %c1_i32 = arith.constant 1 : i32
    %0 = arith.subi %c1_i32, %arg0 : i32
    %1 = arith.muli %arg1, %0 : i32
    %c0_i32 = arith.constant 0 : i32
    %c0_i32_0 = arith.constant 0 : i32
    return %1, %c0_i32 : i32, i32
  }
  func.func @transform_1(%arg0: i32, %arg1: i32) -> (i32, i32) {
    %c0_i32 = arith.constant 0 : i32
    %c0_i32_0 = arith.constant 0 : i32
    %c0_i32_1 = arith.constant 0 : i32
    return %c0_i32, %c0_i32_0 : i32, i32
  }
  func.func @transform_2(%arg0: i32, %arg1: i32) -> (i32, i32) {
    %c0_i32 = arith.constant 0 : i32
    %c0_i32_0 = arith.constant 0 : i32
    %c0_i32_1 = arith.constant 0 : i32
    return %c0_i32, %c0_i32_0 : i32, i32
  }
  func.func @transform_3(%arg0: i32, %arg1: i32) -> (i32, i32) {
    %0 = arith.muli %arg1, %arg0 : i32
    %c0_i32 = arith.constant 0 : i32
    %c0_i32_0 = arith.constant 0 : i32
    return %0, %c0_i32 : i32, i32
  }
}

</mosaic_0001>

<llo_original>
// kernel: tpu_custom_call.1
$region0: #{tpu_custom_call.1}
  #allocation0 [shape = 'u32[]', space=smem, size = 0x4, offset = 0x4, fixed_abs, tag = 'smem constant byte address 0x4 - core index']
  #allocation1 [shape = 'u32[72,128]{1,0:T(1,128)}', space=vmem, size = 0x9000, scoped, tag = 'internal scratch']
  #allocation2 [shape = 'f32[1,128]{1,0:T(1,128)}', space=vmem, size = 0x200, scoped, tag = 'scratch operand']
  #allocation3 [shape = 'f32[1,128]{1,0:T(1,128)}', space=vmem, size = 0x200, scoped, tag = 'scratch operand']
  #allocation4 [shape = 'f32[1,128]{1,0:T(1,128)}', space=vmem, size = 0x200, scoped, tag = 'scratch operand']
  #allocation5 [shape = 'f32[1,128]{1,0:T(1,128)}', space=vmem, size = 0x200, scoped, tag = 'scratch operand']
  #allocation6 [shape = 'f32[400,128]{1,0:T(8,128)}', space=vmem, size = 0x32000, scoped, tag = 'scratch operand']
  %s0 = inlined_call_operand.vmem [shape: f32[400,36], index: 0, kind: input, shape index: {}]
  %s1 = inlined_call_operand.vmem [shape: f32[36,128], index: 1, kind: input, shape index: {}]
  %s2 = inlined_call_operand.vmem [shape: f32[2,128], index: 2, kind: input, shape index: {}]
  %s3 = inlined_call_operand.hbm [shape: f32[400,128], index: 3, kind: output, shape index: {}]
  %s4 = sld [smem:[#allocation0]]
  $region61: #{tpu_custom_call.1} parent=0
    _
  %s6 = ssub.s32 1, %s4
  %s7 = scalar_select 0, %s6, %s4
  $region1: #{tpu_custom_call.1} parent=0
    #allocation7 [shape = 'u8[409600]{0}', space=vmem, size = 0x64000, scoped, tag = 'output window, operand 0']
    #allocation8 [shape = 's32[2]{0}', space=sflag, size = 0x8, scoped, tag = 'scoped memory for tpu_custom_call.1']
    %8 = vsyncpa [#allocation8], 0
    %s9 = scalar_lea.sflag [#allocation8], 1
    %10 = vsyncpa %s9, 0
    loop: start=0, step=1, limit=4
    $region2: #{tpu_custom_call.1} parent=1 // loop_pre_header
      _
    $region3: #{tpu_custom_call.1} parent=1 // loop_header
      %s12 = sphi 0, %s16
      %p13 = scmp.ge.s32.totalorder %s12, 4
      %s19 = sphi 0, %s31
      %s20 = sphi 0, %s27
      %s21 = sphi 0, %s19
      %s22 = sphi 0, %s20
      %s23 = sphi 0, %s21
      %s24 = sphi 0, %s22
      %s38 = sphi 0, %s40
      %s41 = sphi 0, %s38
      %s42 = sphi 0, %s41
      %s58 = sphi 0, %s42
      %s62 = sphi 0, %s62
      %s64 = sphi 0, %s62
      %s65 = sphi 0, %s64
      %s79 = sphi 0, %s65
      %s83 = sphi 0, %s83
      %s85 = sphi 0, %s83
      %s86 = sphi 0, %s85
      %s100 = sphi 0, %s86
      %s108 = sphi 0, %s110
      %s111 = sphi 0, %s108
      %s112 = sphi 0, %s111
      %s128 = sphi 0, %s112
    $region4: #{tpu_custom_call.1} parent=1 // loop_header_branch
      %15 = sbr.rel (%p13) target = $region8
    $region5: #{tpu_custom_call.1} parent=1 // loop_body
      %s17 = ssub.s32 %s12, 1
      %s18 = ssub.s32 %s12, 2
      %s25 = sadd.s32 1, %s20
      %p26 = scmp.ge.s32.totalorder %s25, 1
      %s27 = scalar_select %p26, 0, %s25
      %s28 = sadd.s32 1, %s19
      %s29 = scalar_select %p26, %s28, %s19
      %p30 = scmp.ge.s32.totalorder %s29, 2
      %s31 = scalar_select %p30, 0, %s29
      %s32 = ssub.s32 1, %s19
      %s33 = smul.u32 %s20, %s32
      %s34 = ssub.s32 1, %s31
      %s35 = smul.u32 %s27, %s34
      %s36 = ssub.s32 %s33, %s35
      %p37 = scmp.eq.s32.totalorder %s36, 0
      %s39 = sadd.s32 %s38, 1
      %s40 = scalar_select %p37, %s38, %s39
      %p43 = pneg %p37
      %p44 = scmp.eq.s32.totalorder %s12, 1
      %p45 = por %p43, %p44
      %p46 = scmp.ne.s32.totalorder %s38, %s41
      %p47 = scmp.eq.s32.totalorder %s12, 0
      %p48 = por %p46, %p47
      %p49 = scmp.ne.s32.totalorder %s38, %s41
      %p50 = scmp.eq.s32.totalorder %s17, 1
      %p51 = por %p49, %p50
      %p52 = scmp.ne.s32.totalorder %s41, %s42
      %p53 = scmp.eq.s32.totalorder %s17, 0
      %p54 = por %p52, %p53
      %p55 = scmp.ne.s32.totalorder %s41, %s42
      %p56 = scmp.eq.s32.totalorder %s18, 1
      %p57 = por %p55, %p56
      %p59 = scmp.ne.s32.totalorder %s42, %s58
      %p60 = scmp.eq.s32.totalorder %s18, 0
      %p61 = por %p59, %p60
      %s63 = sadd.s32 %s62, 1
      %p66 = scmp.eq.s32.totalorder %s12, 1
      %p67 = scmp.ne.s32.totalorder %s62, %s64
      %p68 = scmp.eq.s32.totalorder %s12, 0
      %p69 = por %p67, %p68
      %p70 = scmp.ne.s32.totalorder %s62, %s64
      %p71 = scmp.eq.s32.totalorder %s17, 1
      %p72 = por %p70, %p71
      %p73 = scmp.ne.s32.totalorder %s64, %s65
      %p74 = scmp.eq.s32.totalorder %s17, 0
      %p75 = por %p73, %p74
      %p76 = scmp.ne.s32.totalorder %s64, %s65
      %p77 = scmp.eq.s32.totalorder %s18, 1
      %p78 = por %p76, %p77
      %p80 = scmp.ne.s32.totalorder %s65, %s79
      %p81 = scmp.eq.s32.totalorder %s18, 0
      %p82 = por %p80, %p81
      %s84 = sadd.s32 %s83, 1
      %p87 = scmp.eq.s32.totalorder %s12, 1
      %p88 = scmp.ne.s32.totalorder %s83, %s85
      %p89 = scmp.eq.s32.totalorder %s12, 0
      %p90 = por %p88, %p89
      %p91 = scmp.ne.s32.totalorder %s83, %s85
      %p92 = scmp.eq.s32.totalorder %s17, 1
      %p93 = por %p91, %p92
      %p94 = scmp.ne.s32.totalorder %s85, %s86
      %p95 = scmp.eq.s32.totalorder %s17, 0
      %p96 = por %p94, %p95
      %p97 = scmp.ne.s32.totalorder %s85, %s86
      %p98 = scmp.eq.s32.totalorder %s18, 1
      %p99 = por %p97, %p98
      %p101 = scmp.ne.s32.totalorder %s86, %s100
      %p102 = scmp.eq.s32.totalorder %s18, 0
      %p103 = por %p101, %p102
      %s104 = smul.u32 %s20, %s19
      %s105 = smul.u32 %s27, %s31
      %s106 = ssub.s32 %s104, %s105
      %p107 = scmp.eq.s32.totalorder %s106, 0
      %s109 = sadd.s32 %s108, 1
      %s110 = scalar_select %p107, %s108, %s109
      %p113 = pneg %p107
      %p114 = scmp.eq.s32.totalorder %s12, 1
      %p115 = por %p113, %p114
      %p116 = scmp.ne.s32.totalorder %s108, %s111
      %p117 = scmp.eq.s32.totalorder %s12, 0
      %p118 = por %p116, %p117
      %p119 = scmp.ne.s32.totalorder %s108, %s111
      %p120 = scmp.eq.s32.totalorder %s17, 1
      %p121 = por %p119, %p120
      %p122 = scmp.ne.s32.totalorder %s111, %s112
      %p123 = scmp.eq.s32.totalorder %s17, 0
      %p124 = por %p122, %p123
      %p125 = scmp.ne.s32.totalorder %s111, %s112
      %p126 = scmp.eq.s32.totalorder %s18, 1
      %p127 = por %p125, %p126
      %p129 = scmp.ne.s32.totalorder %s112, %s128
      %p130 = scmp.eq.s32.totalorder %s18, 0
      %p131 = por %p129, %p130
      %p132 = scmp.le.s32.totalorder 1, %s12
      %p133 = scmp.lt.s32.totalorder %s12, 3
      %p134 = pnand %p132, %p133
      %p135 = pneg %p134
      // Predicated region
      $region9: #{tpu_custom_call.1} parent=5 // pred_check
        _
      $region10: #{tpu_custom_call.1} parent=5 // pred_check_branch
        %137 = sbr.rel (%p134) target = $region12
      $region11: #{tpu_custom_call.1} parent=5 // pred_region
        %s138 = ssub.s32 %s12, 1
        // Predicated region
        $region13: #{tpu_custom_call.1} parent=11 // pred_check
          %p139 = pneg %p75
        $region14: #{tpu_custom_call.1} parent=11 // pred_check_branch
          %141 = sbr.rel (%p139) target = $region16
        $region15: #{tpu_custom_call.1} parent=11 // pred_region
          _
        $region16: #{tpu_custom_call.1} parent=11 // pred_fallthru
          _
        // Predicated region
        $region17: #{tpu_custom_call.1} parent=11 // pred_check
          %p142 = pneg %p96
        $region18: #{tpu_custom_call.1} parent=11 // pred_check_branch
          %144 = sbr.rel (%p142) target = $region20
        $region19: #{tpu_custom_call.1} parent=11 // pred_region
          _
        $region20: #{tpu_custom_call.1} parent=11 // pred_fallthru
          _
      $region12: #{tpu_custom_call.1} parent=5 // pred_fallthru
        _
      %p145 = scmp.lt.s32.totalorder %s12, 2
      // Predicated region
      $region21: #{tpu_custom_call.1} parent=5 // pred_check
        %p146 = pneg %p145
      $region22: #{tpu_custom_call.1} parent=5 // pred_check_branch
        %148 = sbr.rel (%p146) target = $region24
      $region23: #{tpu_custom_call.1} parent=5 // pred_region
        // Predicated region
        $region25: #{tpu_custom_call.1} parent=23 // pred_check
          %p149 = pneg %p48
        $region26: #{tpu_custom_call.1} parent=23 // pred_check_branch
          %151 = sbr.rel (%p149) target = $region28
        $region27: #{tpu_custom_call.1} parent=23 // pred_region
          %s152 = ssub.s32 1, %s19
          %s153 = smul.u32 %s20, %s152
          %s154 = smul.u32 50, %s153
          %p155 = scmp.lt.s32.totalorder %s154, 49
          %s156 = scalar_select %p155, %s154, 49
          %s157 = smul.addr %s156, 8
          %s158 = scalar_lea.vmem %s0, %s157
          %s159 = ssub.s32 1, %s19
          %s160 = smul.u32 %s20, %s159
          %s161 = smul.u32 50, %s160
        $region28: #{tpu_custom_call.1} parent=23 // pred_fallthru
          _
      $region24: #{tpu_custom_call.1} parent=5 // pred_fallthru
        _
      %p162 = scmp.le.s32.totalorder 1, %s12
      %p163 = scmp.lt.s32.totalorder %s12, 3
      %p164 = pnand %p162, %p163
      %p165 = pneg %p164
      // Predicated region
      $region29: #{tpu_custom_call.1} parent=5 // pred_check
        _
      $region30: #{tpu_custom_call.1} parent=5 // pred_check_branch
        %167 = sbr.rel (%p164) target = $region32
      $region31: #{tpu_custom_call.1} parent=5 // pred_region
        %s168 = ssub.s32 %s12, 1
        %s169 = ssub.s32 1, %s21
        %s170 = smul.u32 %s22, %s169
        %s171 = smul.u32 50, %s170
        %p172 = scmp.lt.s32.totalorder %s171, 49
        %s173 = scalar_select %p172, %s171, 49
        %s174 = smul.addr %s173, 8
        %s175 = scalar_lea.vmem %s0, %s174
        %p176 = pneg %p54
        %p177 = pneg %p51
        %p178 = pneg %p75
        %p179 = pneg %p72
        %p180 = pneg %p96
        %p181 = pneg %p93
        %p182 = pneg %p124
        %p183 = pneg %p121
        %s184 = sand.u32 %s111, 1
        %s185 = scalar_lea.sflag [#allocation8], %s184
        %s186 = sand.u32 %s111, 1
        %s187 = smul.addr %s186, 400
        %s188 = scalar_lea.vmem [#allocation7], %s187
        %s189 = ssub.s32 1, %s21
        %s190 = smul.u32 %s22, %s189
        %s191 = smul.u32 50, %s190
        %p192 = scmp.lt.s32.totalorder %s191, 49
        %s193 = scalar_select %p192, %s191, 49
        %s194 = smul.addr %s193, 8
        %s195 = scalar_lea.vmem %s0, %s194
        %s196 = ssub.s32 1, %s21
        %s197 = smul.u32 %s22, %s196
        %s198 = smul.u32 50, %s197
        %s199 = smul.u32 %s22, %s21
        %s200 = smul.u32 50, %s199
        %p201 = scmp.eq.s32.totalorder %s21, 0
        %p202 = scmp.eq.s32.totalorder %s22, 0
        %p203 = pnand %p201, %p202
        %p204 = pneg %p203
        // Predicated region
        $region33: #{tpu_custom_call.1} parent=31 // pred_check
          _
        $region34: #{tpu_custom_call.1} parent=31 // pred_check_branch
          %206 = sbr.rel (%p203) target = $region36
        $region35: #{tpu_custom_call.1} parent=31 // pred_region
          %207 = vst [vmem:[#allocation2] sm:$0x1] 0.0
          %208 = vst [vmem:[#allocation3] sm:$0x1] 0.0
          %209 = vst [vmem:[%s188] sm:$0xff] 0.0
          %210 = vst [vmem:[%s188 + $0x8] sm:$0xff] 0.0
          %211 = vst [vmem:[%s188 + $0x10] sm:$0xff] 0.0
          %212 = vst [vmem:[%s188 + $0x18] sm:$0xff] 0.0
          %213 = vst [vmem:[%s188 + $0x20] sm:$0xff] 0.0
          %214 = vst [vmem:[%s188 + $0x28] sm:$0xff] 0.0
          %215 = vst [vmem:[%s188 + $0x30] sm:$0xff] 0.0
          %216 = vst [vmem:[%s188 + $0x38] sm:$0xff] 0.0
          %217 = vst [vmem:[%s188 + $0x40] sm:$0xff] 0.0
          %218 = vst [vmem:[%s188 + $0x48] sm:$0xff] 0.0
          %219 = vst [vmem:[%s188 + $0x50] sm:$0xff] 0.0
          %220 = vst [vmem:[%s188 + $0x58] sm:$0xff] 0.0
          %221 = vst [vmem:[%s188 + $0x60] sm:$0xff] 0.0
          %222 = vst [vmem:[%s188 + $0x68] sm:$0xff] 0.0
          %223 = vst [vmem:[%s188 + $0x70] sm:$0xff] 0.0
          %224 = vst [vmem:[%s188 + $0x78] sm:$0xff] 0.0
          %225 = vst [vmem:[%s188 + $0x80] sm:$0xff] 0.0
          %226 = vst [vmem:[%s188 + $0x88] sm:$0xff] 0.0
          %227 = vst [vmem:[%s188 + $0x90] sm:$0xff] 0.0
          %228 = vst [vmem:[%s188 + $0x98] sm:$0xff] 0.0
          %229 = vst [vmem:[%s188 + $0xa0] sm:$0xff] 0.0
          %230 = vst [vmem:[%s188 + $0xa8] sm:$0xff] 0.0
          %231 = vst [vmem:[%s188 + $0xb0] sm:$0xff] 0.0
          %232 = vst [vmem:[%s188 + $0xb8] sm:$0xff] 0.0
          %233 = vst [vmem:[%s188 + $0xc0] sm:$0xff] 0.0
          %234 = vst [vmem:[%s188 + $0xc8] sm:$0xff] 0.0
          %235 = vst [vmem:[%s188 + $0xd0] sm:$0xff] 0.0
          %236 = vst [vmem:[%s188 + $0xd8] sm:$0xff] 0.0
          %237 = vst [vmem:[%s188 + $0xe0] sm:$0xff] 0.0
          %238 = vst [vmem:[%s188 + $0xe8] sm:$0xff] 0.0
          %239 = vst [vmem:[%s188 + $0xf0] sm:$0xff] 0.0
          %240 = vst [vmem:[%s188 + $0xf8] sm:$0xff] 0.0
          %241 = vst [vmem:[%s188 + $0x100] sm:$0xff] 0.0
          %242 = vst [vmem:[%s188 + $0x108] sm:$0xff] 0.0
          %243 = vst [vmem:[%s188 + $0x110] sm:$0xff] 0.0
          %244 = vst [vmem:[%s188 + $0x118] sm:$0xff] 0.0
          %245 = vst [vmem:[%s188 + $0x120] sm:$0xff] 0.0
          %246 = vst [vmem:[%s188 + $0x128] sm:$0xff] 0.0
          %247 = vst [vmem:[%s188 + $0x130] sm:$0xff] 0.0
          %248 = vst [vmem:[%s188 + $0x138] sm:$0xff] 0.0
          %249 = vst [vmem:[%s188 + $0x140] sm:$0xff] 0.0
          %250 = vst [vmem:[%s188 + $0x148] sm:$0xff] 0.0
          %251 = vst [vmem:[%s188 + $0x150] sm:$0xff] 0.0
          %252 = vst [vmem:[%s188 + $0x158] sm:$0xff] 0.0
          %253 = vst [vmem:[%s188 + $0x160] sm:$0xff] 0.0
          %254 = vst [vmem:[%s188 + $0x168] sm:$0xff] 0.0
          %255 = vst [vmem:[%s188 + $0x170] sm:$0xff] 0.0
          %256 = vst [vmem:[%s188 + $0x178] sm:$0xff] 0.0
          %257 = vst [vmem:[%s188 + $0x180] sm:$0xff] 0.0
          %258 = vst [vmem:[%s188 + $0x188] sm:$0xff] 0.0
        $region36: #{tpu_custom_call.1} parent=31 // pred_fallthru
          _
        // Predicated region
        $region37: #{tpu_custom_call.1} parent=31 // pred_check
          %p259 = pneg %p201
        $region38: #{tpu_custom_call.1} parent=31 // pred_check_branch
          %261 = sbr.rel (%p259) target = $region40
        $region39: #{tpu_custom_call.1} parent=31 // pred_region
          %v262 = vld [vmem:[%s195] sm:$0xff]
          %v263 = vld [vmem:[%s195 + $0x8] sm:$0xff]
          %v264 = vld [vmem:[%s195 + $0x10] sm:$0xff]
          %v265 = vld [vmem:[%s195 + $0x18] sm:$0xff]
          %v266 = vld [vmem:[%s195 + $0x20] sm:$0xff]
          %v267 = vld [vmem:[%s195 + $0x28] sm:$0xff]
          %v268 = vld [vmem:[%s195 + $0x30] sm:$0xff]
          %v269 = vld [vmem:[%s195 + $0x38] sm:$0xff]
          %v270 = vld [vmem:[%s195 + $0x40] sm:$0xff]
          %v271 = vld [vmem:[%s195 + $0x48] sm:$0xff]
          %v272 = vld [vmem:[%s195 + $0x50] sm:$0xff]
          %v273 = vld [vmem:[%s195 + $0x58] sm:$0xff]
          %v274 = vld [vmem:[%s195 + $0x60] sm:$0xff]
          %v275 = vld [vmem:[%s195 + $0x68] sm:$0xff]
          %v276 = vld [vmem:[%s195 + $0x70] sm:$0xff]
          %v277 = vld [vmem:[%s195 + $0x78] sm:$0xff]
          %v278 = vld [vmem:[%s195 + $0x80] sm:$0xff]
          %v279 = vld [vmem:[%s195 + $0x88] sm:$0xff]
          %v280 = vld [vmem:[%s195 + $0x90] sm:$0xff]
          %v281 = vld [vmem:[%s195 + $0x98] sm:$0xff]
          %v282 = vld [vmem:[%s195 + $0xa0] sm:$0xff]
          %v283 = vld [vmem:[%s195 + $0xa8] sm:$0xff]
          %v284 = vld [vmem:[%s195 + $0xb0] sm:$0xff]
          %v285 = vld [vmem:[%s195 + $0xb8] sm:$0xff]
          %v286 = vld [vmem:[%s195 + $0xc0] sm:$0xff]
          %v287 = vld [vmem:[%s195 + $0xc8] sm:$0xff]
          %v288 = vld [vmem:[%s195 + $0xd0] sm:$0xff]
          %v289 = vld [vmem:[%s195 + $0xd8] sm:$0xff]
          %v290 = vld [vmem:[%s195 + $0xe0] sm:$0xff]
          %v291 = vld [vmem:[%s195 + $0xe8] sm:$0xff]
          %v292 = vld [vmem:[%s195 + $0xf0] sm:$0xff]
          %v293 = vld [vmem:[%s195 + $0xf8] sm:$0xff]
          %v294 = vld [vmem:[%s195 + $0x100] sm:$0xff]
          %v295 = vld [vmem:[%s195 + $0x108] sm:$0xff]
          %v296 = vld [vmem:[%s195 + $0x110] sm:$0xff]
          %v297 = vld [vmem:[%s195 + $0x118] sm:$0xff]
          %v298 = vld [vmem:[%s195 + $0x120] sm:$0xff]
          %v299 = vld [vmem:[%s195 + $0x128] sm:$0xff]
          %v300 = vld [vmem:[%s195 + $0x130] sm:$0xff]
          %v301 = vld [vmem:[%s195 + $0x138] sm:$0xff]
          %v302 = vld [vmem:[%s195 + $0x140] sm:$0xff]
          %v303 = vld [vmem:[%s195 + $0x148] sm:$0xff]
          %v304 = vld [vmem:[%s195 + $0x150] sm:$0xff]
          %v305 = vld [vmem:[%s195 + $0x158] sm:$0xff]
          %v306 = vld [vmem:[%s195 + $0x160] sm:$0xff]
          %v307 = vld [vmem:[%s195 + $0x168] sm:$0xff]
          %v308 = vld [vmem:[%s195 + $0x170] sm:$0xff]
          %v309 = vld [vmem:[%s195 + $0x178] sm:$0xff]
          %v310 = vld [vmem:[%s195 + $0x180] sm:$0xff]
          %v311 = vld [vmem:[%s195 + $0x188] sm:$0xff]
          %v312 = vld [vmem:[%s1] sm:$0xff]
          %v313 = vld [vmem:[%s1 + $0x8] sm:$0xff]
          %v314 = vld [vmem:[%s1 + $0x10] sm:$0xff]
          %v315 = vld [vmem:[%s1 + $0x18] sm:$0xff]
          %v316 = vld [vmem:[%s1 + $0x20] sm:$0xf]
          %vm317 = vcmask 293888
          %v319 = vsel %vm317, %v262, 0
          %v322 = vsel %vm317, %v263, 0
          %v325 = vsel %vm317, %v264, 0
          %v328 = vsel %vm317, %v265, 0
          %v331 = vsel %vm317, %v266, 0
          %v334 = vsel %vm317, %v267, 0
          %v337 = vsel %vm317, %v268, 0
          %v340 = vsel %vm317, %v269, 0
          %v343 = vsel %vm317, %v270, 0
          %v346 = vsel %vm317, %v271, 0
          %v349 = vsel %vm317, %v272, 0
          %v352 = vsel %vm317, %v273, 0
          %v355 = vsel %vm317, %v274, 0
          %v358 = vsel %vm317, %v275, 0
          %v361 = vsel %vm317, %v276, 0
          %v364 = vsel %vm317, %v277, 0
          %v367 = vsel %vm317, %v278, 0
          %v370 = vsel %vm317, %v279, 0
          %v373 = vsel %vm317, %v280, 0
          %v376 = vsel %vm317, %v281, 0
          %v379 = vsel %vm317, %v282, 0
          %v382 = vsel %vm317, %v283, 0
          %v385 = vsel %vm317, %v284, 0
          %v388 = vsel %vm317, %v285, 0
          %v391 = vsel %vm317, %v286, 0
          %v394 = vsel %vm317, %v287, 0
          %v397 = vsel %vm317, %v288, 0
          %v400 = vsel %vm317, %v289, 0
          %v403 = vsel %vm317, %v290, 0
          %v406 = vsel %vm317, %v291, 0
          %v409 = vsel %vm317, %v292, 0
          %v412 = vsel %vm317, %v293, 0
          %v415 = vsel %vm317, %v294, 0
          %v418 = vsel %vm317, %v295, 0
          %v421 = vsel %vm317, %v296, 0
          %v424 = vsel %vm317, %v297, 0
          %v427 = vsel %vm317, %v298, 0
          %v430 = vsel %vm317, %v299, 0
          %v433 = vsel %vm317, %v300, 0
          %v436 = vsel %vm317, %v301, 0
          %v439 = vsel %vm317, %v302, 0
          %v442 = vsel %vm317, %v303, 0
          %v445 = vsel %vm317, %v304, 0
          %v448 = vsel %vm317, %v305, 0
          %v451 = vsel %vm317, %v306, 0
          %v454 = vsel %vm317, %v307, 0
          %v457 = vsel %vm317, %v308, 0
          %v460 = vsel %vm317, %v309, 0
          %v463 = vsel %vm317, %v310, 0
          %v466 = vsel %vm317, %v311, 0
          %vm468 = vcmask 1043456
          %v470 = vsel %vm468, %v316, 0
          %472 = vmatpush.msra.mxu0 0.0
          %473 = vmatpush.msra.mxu0 0.0
          %474 = vmatpush.msra.mxu0 0.0
          %475 = vmatpush.msra.mxu0 0.0
          %476 = vmatpush.msra.mxu0 0.0
          %477 = vmatpush.msra.mxu0 0.0
          %478 = vmatpush.msra.mxu0 0.0
          %479 = vmatpush.msra.mxu0 0.0
          %480 = vmatpush.msra.mxu0 0.0
          %481 = vmatpush.msra.mxu0 0.0
          %482 = vmatpush.msra.mxu0 0.0
          %483 = vmatpush.msra.mxu0 %v470
          %484 = vmatpush.msra.mxu0 %v315
          %485 = vmatpush.msra.mxu0 %v314
          %486 = vmatpush.msra.mxu0 %v313
          %487 = vmatpush.msra.mxu0 %v312
          %488 = vmatmul.f32.gmra.mxu0 %v319
          %v489 = vpop.f32.mrf.mxu0
          %v490 = vadd.f32 0.0, %v489
          %491 = vmatmul.f32.gmra.mxu0 %v322
          %v492 = vpop.f32.mrf.mxu0
          %v493 = vadd.f32 0.0, %v492
          %494 = vmatmul.f32.gmra.mxu0 %v325
          %v495 = vpop.f32.mrf.mxu0
          %v496 = vadd.f32 0.0, %v495
          %497 = vmatmul.f32.gmra.mxu0 %v328
          %v498 = vpop.f32.mrf.mxu0
          %v499 = vadd.f32 0.0, %v498
          %500 = vmatmul.f32.gmra.mxu0 %v331
          %v501 = vpop.f32.mrf.mxu0
          %v502 = vadd.f32 0.0, %v501
          %503 = vmatmul.f32.gmra.mxu0 %v334
          %v504 = vpop.f32.mrf.mxu0
          %v505 = vadd.f32 0.0, %v504
          %506 = vmatmul.f32.gmra.mxu0 %v337
          %v507 = vpop.f32.mrf.mxu0
          %v508 = vadd.f32 0.0, %v507
          %509 = vmatmul.f32.gmra.mxu0 %v340
          %v510 = vpop.f32.mrf.mxu0
          %v511 = vadd.f32 0.0, %v510
          %512 = vmatmul.f32.gmra.mxu0 %v343
          %v513 = vpop.f32.mrf.mxu0
          %v514 = vadd.f32 0.0, %v513
          %515 = vmatmul.f32.gmra.mxu0 %v346
          %v516 = vpop.f32.mrf.mxu0
          %v517 = vadd.f32 0.0, %v516
          %518 = vmatmul.f32.gmra.mxu0 %v349
          %v519 = vpop.f32.mrf.mxu0
          %v520 = vadd.f32 0.0, %v519
          %521 = vmatmul.f32.gmra.mxu0 %v352
          %v522 = vpop.f32.mrf.mxu0
          %v523 = vadd.f32 0.0, %v522
          %524 = vmatmul.f32.gmra.mxu0 %v355
          %v525 = vpop.f32.mrf.mxu0
          %v526 = vadd.f32 0.0, %v525
          %527 = vmatmul.f32.gmra.mxu0 %v358
          %v528 = vpop.f32.mrf.mxu0
          %v529 = vadd.f32 0.0, %v528
          %530 = vmatmul.f32.gmra.mxu0 %v361
          %v531 = vpop.f32.mrf.mxu0
          %v532 = vadd.f32 0.0, %v531
          %533 = vmatmul.f32.gmra.mxu0 %v364
          %v534 = vpop.f32.mrf.mxu0
          %v535 = vadd.f32 0.0, %v534
          %536 = vmatmul.f32.gmra.mxu0 %v367
          %v537 = vpop.f32.mrf.mxu0
          %v538 = vadd.f32 0.0, %v537
          %539 = vmatmul.f32.gmra.mxu0 %v370
          %v540 = vpop.f32.mrf.mxu0
          %v541 = vadd.f32 0.0, %v540
          %542 = vmatmul.f32.gmra.mxu0 %v373
          %v543 = vpop.f32.mrf.mxu0
          %v544 = vadd.f32 0.0, %v543
          %545 = vmatmul.f32.gmra.mxu0 %v376
          %v546 = vpop.f32.mrf.mxu0
          %v547 = vadd.f32 0.0, %v546
          %548 = vmatmul.f32.gmra.mxu0 %v379
          %v549 = vpop.f32.mrf.mxu0
          %v550 = vadd.f32 0.0, %v549
          %551 = vmatmul.f32.gmra.mxu0 %v382
          %v552 = vpop.f32.mrf.mxu0
          %v553 = vadd.f32 0.0, %v552
          %554 = vmatmul.f32.gmra.mxu0 %v385
          %v555 = vpop.f32.mrf.mxu0
          %v556 = vadd.f32 0.0, %v555
          %557 = vmatmul.f32.gmra.mxu0 %v388
          %v558 = vpop.f32.mrf.mxu0
          %v559 = vadd.f32 0.0, %v558
          %560 = vmatmul.f32.gmra.mxu0 %v391
          %v561 = vpop.f32.mrf.mxu0
          %v562 = vadd.f32 0.0, %v561
          %563 = vmatmul.f32.gmra.mxu0 %v394
          %v564 = vpop.f32.mrf.mxu0
          %v565 = vadd.f32 0.0, %v564
          %566 = vmatmul.f32.gmra.mxu0 %v397
          %v567 = vpop.f32.mrf.mxu0
          %v568 = vadd.f32 0.0, %v567
          %569 = vmatmul.f32.gmra.mxu0 %v400
          %v570 = vpop.f32.mrf.mxu0
          %v571 = vadd.f32 0.0, %v570
          %572 = vmatmul.f32.gmra.mxu0 %v403
          %v573 = vpop.f32.mrf.mxu0
          %v574 = vadd.f32 0.0, %v573
          %575 = vmatmul.f32.gmra.mxu0 %v406
          %v576 = vpop.f32.mrf.mxu0
          %v577 = vadd.f32 0.0, %v576
          %578 = vmatmul.f32.gmra.mxu0 %v409
          %v579 = vpop.f32.mrf.mxu0
          %v580 = vadd.f32 0.0, %v579
          %581 = vmatmul.f32.gmra.mxu0 %v412
          %v582 = vpop.f32.mrf.mxu0
          %v583 = vadd.f32 0.0, %v582
          %584 = vmatmul.f32.gmra.mxu0 %v415
          %v585 = vpop.f32.mrf.mxu0
          %v586 = vadd.f32 0.0, %v585
          %587 = vmatmul.f32.gmra.mxu0 %v418
          %v588 = vpop.f32.mrf.mxu0
          %v589 = vadd.f32 0.0, %v588
          %590 = vmatmul.f32.gmra.mxu0 %v421
          %v591 = vpop.f32.mrf.mxu0
          %v592 = vadd.f32 0.0, %v591
          %593 = vmatmul.f32.gmra.mxu0 %v424
          %v594 = vpop.f32.mrf.mxu0
          %v595 = vadd.f32 0.0, %v594
          %596 = vmatmul.f32.gmra.mxu0 %v427
          %v597 = vpop.f32.mrf.mxu0
          %v598 = vadd.f32 0.0, %v597
          %599 = vmatmul.f32.gmra.mxu0 %v430
          %v600 = vpop.f32.mrf.mxu0
          %v601 = vadd.f32 0.0, %v600
          %602 = vmatmul.f32.gmra.mxu0 %v433
          %v603 = vpop.f32.mrf.mxu0
          %v604 = vadd.f32 0.0, %v603
          %605 = vmatmul.f32.gmra.mxu0 %v436
          %v606 = vpop.f32.mrf.mxu0
          %v607 = vadd.f32 0.0, %v606
          %608 = vmatmul.f32.gmra.mxu0 %v439
          %v609 = vpop.f32.mrf.mxu0
          %v610 = vadd.f32 0.0, %v609
          %611 = vmatmul.f32.gmra.mxu0 %v442
          %v612 = vpop.f32.mrf.mxu0
          %v613 = vadd.f32 0.0, %v612
          %614 = vmatmul.f32.gmra.mxu0 %v445
          %v615 = vpop.f32.mrf.mxu0
          %v616 = vadd.f32 0.0, %v615
          %617 = vmatmul.f32.gmra.mxu0 %v448
          %v618 = vpop.f32.mrf.mxu0
          %v619 = vadd.f32 0.0, %v618
          %620 = vmatmul.f32.gmra.mxu0 %v451
          %v621 = vpop.f32.mrf.mxu0
          %v622 = vadd.f32 0.0, %v621
          %623 = vmatmul.f32.gmra.mxu0 %v454
          %v624 = vpop.f32.mrf.mxu0
          %v625 = vadd.f32 0.0, %v624
          %626 = vmatmul.f32.gmra.mxu0 %v457
          %v627 = vpop.f32.mrf.mxu0
          %v628 = vadd.f32 0.0, %v627
          %629 = vmatmul.f32.gmra.mxu0 %v460
          %v630 = vpop.f32.mrf.mxu0
          %v631 = vadd.f32 0.0, %v630
          %632 = vmatmul.f32.gmra.mxu0 %v463
          %v633 = vpop.f32.mrf.mxu0
          %v634 = vadd.f32 0.0, %v633
          %635 = vmatmul.f32.gmra.mxu0 %v466
          %v636 = vpop.f32.mrf.mxu0
          %v637 = vadd.f32 0.0, %v636
          %638 = vdwg.mxu0
          %v639 = vld [vmem:[#allocation2] sm:$0x1]
          %v640 = vadd.f32 %v490, %v493
          %v641 = vadd.f32 %v640, %v496
          %v642 = vadd.f32 %v641, %v499
          %v643 = vadd.f32 %v642, %v502
          %v644 = vadd.f32 %v643, %v505
          %v645 = vadd.f32 %v644, %v508
          %v646 = vadd.f32 %v645, %v511
          %v647 = vadd.f32 %v646, %v514
          %v648 = vadd.f32 %v647, %v517
          %v649 = vadd.f32 %v648, %v520
          %v650 = vadd.f32 %v649, %v523
          %v651 = vadd.f32 %v650, %v526
          %v652 = vadd.f32 %v651, %v529
          %v653 = vadd.f32 %v652, %v532
          %v654 = vadd.f32 %v653, %v535
          %v655 = vadd.f32 %v654, %v538
          %v656 = vadd.f32 %v655, %v541
          %v657 = vadd.f32 %v656, %v544
          %v658 = vadd.f32 %v657, %v547
          %v659 = vadd.f32 %v658, %v550
          %v660 = vadd.f32 %v659, %v553
          %v661 = vadd.f32 %v660, %v556
          %v662 = vadd.f32 %v661, %v559
          %v663 = vadd.f32 %v662, %v562
          %v664 = vadd.f32 %v663, %v565
          %v665 = vadd.f32 %v664, %v568
          %v666 = vadd.f32 %v665, %v571
          %v667 = vadd.f32 %v666, %v574
          %v668 = vadd.f32 %v667, %v577
          %v669 = vadd.f32 %v668, %v580
          %v670 = vadd.f32 %v669, %v583
          %v671 = vadd.f32 %v670, %v586
          %v672 = vadd.f32 %v671, %v589
          %v673 = vadd.f32 %v672, %v592
          %v674 = vadd.f32 %v673, %v595
          %v675 = vadd.f32 %v674, %v598
          %v676 = vadd.f32 %v675, %v601
          %v677 = vadd.f32 %v676, %v604
          %v678 = vadd.f32 %v677, %v607
          %v679 = vadd.f32 %v678, %v610
          %v680 = vadd.f32 %v679, %v613
          %v681 = vadd.f32 %v680, %v616
          %v682 = vadd.f32 %v681, %v619
          %v683 = vadd.f32 %v682, %v622
          %v684 = vadd.f32 %v683, %v625
          %v685 = vadd.f32 %v684, %v628
          %v686 = vadd.f32 %v685, %v631
          %v687 = vadd.f32 %v686, %v634
          %v688 = vadd.f32 %v687, %v637
          %v689 = vrot.slane %v688, 4
          %v690 = vadd.f32 %v688, %v689
          %v691 = vrot.slane %v690, 2
          %v692 = vadd.f32 %v690, %v691
          %v693 = vrot.slane %v692, 1
          %v694 = vadd.f32 %v692, %v693
          %v695 = vadd.f32 %v639, %v694
          %696 = vst [vmem:[#allocation2] sm:$0x1] %v695
          %v697 = vld [vmem:[#allocation3] sm:$0x1]
          %v698 = vmul.f32 %v490, %v490
          %v699 = vmul.f32 %v493, %v493
          %v700 = vmul.f32 %v496, %v496
          %v701 = vmul.f32 %v499, %v499
          %v702 = vmul.f32 %v502, %v502
          %v703 = vmul.f32 %v505, %v505
          %v704 = vmul.f32 %v508, %v508
          %v705 = vmul.f32 %v511, %v511
          %v706 = vmul.f32 %v514, %v514
          %v707 = vmul.f32 %v517, %v517
          %v708 = vmul.f32 %v520, %v520
          %v709 = vmul.f32 %v523, %v523
          %v710 = vmul.f32 %v526, %v526
          %v711 = vmul.f32 %v529, %v529
          %v712 = vmul.f32 %v532, %v532
          %v713 = vmul.f32 %v535, %v535
          %v714 = vmul.f32 %v538, %v538
          %v715 = vmul.f32 %v541, %v541
          %v716 = vmul.f32 %v544, %v544
          %v717 = vmul.f32 %v547, %v547
          %v718 = vmul.f32 %v550, %v550
          %v719 = vmul.f32 %v553, %v553
          %v720 = vmul.f32 %v556, %v556
          %v721 = vmul.f32 %v559, %v559
          %v722 = vmul.f32 %v562, %v562
          %v723 = vmul.f32 %v565, %v565
          %v724 = vmul.f32 %v568, %v568
          %v725 = vmul.f32 %v571, %v571
          %v726 = vmul.f32 %v574, %v574
          %v727 = vmul.f32 %v577, %v577
          %v728 = vmul.f32 %v580, %v580
          %v729 = vmul.f32 %v583, %v583
          %v730 = vmul.f32 %v586, %v586
          %v731 = vmul.f32 %v589, %v589
          %v732 = vmul.f32 %v592, %v592
          %v733 = vmul.f32 %v595, %v595
          %v734 = vmul.f32 %v598, %v598
          %v735 = vmul.f32 %v601, %v601
          %v736 = vmul.f32 %v604, %v604
          %v737 = vmul.f32 %v607, %v607
          %v738 = vmul.f32 %v610, %v610
          %v739 = vmul.f32 %v613, %v613
          %v740 = vmul.f32 %v616, %v616
          %v741 = vmul.f32 %v619, %v619
          %v742 = vmul.f32 %v622, %v622
          %v743 = vmul.f32 %v625, %v625
          %v744 = vmul.f32 %v628, %v628
          %v745 = vmul.f32 %v631, %v631
          %v746 = vmul.f32 %v634, %v634
          %v747 = vmul.f32 %v637, %v637
          %v748 = vadd.f32 %v698, %v699
          %v749 = vadd.f32 %v748, %v700
          %v750 = vadd.f32 %v749, %v701
          %v751 = vadd.f32 %v750, %v702
          %v752 = vadd.f32 %v751, %v703
          %v753 = vadd.f32 %v752, %v704
          %v754 = vadd.f32 %v753, %v705
          %v755 = vadd.f32 %v754, %v706
          %v756 = vadd.f32 %v755, %v707
          %v757 = vadd.f32 %v756, %v708
          %v758 = vadd.f32 %v757, %v709
          %v759 = vadd.f32 %v758, %v710
          %v760 = vadd.f32 %v759, %v711
          %v761 = vadd.f32 %v760, %v712
          %v762 = vadd.f32 %v761, %v713
          %v763 = vadd.f32 %v762, %v714
          %v764 = vadd.f32 %v763, %v715
          %v765 = vadd.f32 %v764, %v716
          %v766 = vadd.f32 %v765, %v717
          %v767 = vadd.f32 %v766, %v718
          %v768 = vadd.f32 %v767, %v719
          %v769 = vadd.f32 %v768, %v720
          %v770 = vadd.f32 %v769, %v721
          %v771 = vadd.f32 %v770, %v722
          %v772 = vadd.f32 %v771, %v723
          %v773 = vadd.f32 %v772, %v724
          %v774 = vadd.f32 %v773, %v725
          %v775 = vadd.f32 %v774, %v726
          %v776 = vadd.f32 %v775, %v727
          %v777 = vadd.f32 %v776, %v728
          %v778 = vadd.f32 %v777, %v729
          %v779 = vadd.f32 %v778, %v730
          %v780 = vadd.f32 %v779, %v731
          %v781 = vadd.f32 %v780, %v732
          %v782 = vadd.f32 %v781, %v733
          %v783 = vadd.f32 %v782, %v734
          %v784 = vadd.f32 %v783, %v735
          %v785 = vadd.f32 %v784, %v736
          %v786 = vadd.f32 %v785, %v737
          %v787 = vadd.f32 %v786, %v738
          %v788 = vadd.f32 %v787, %v739
          %v789 = vadd.f32 %v788, %v740
          %v790 = vadd.f32 %v789, %v741
          %v791 = vadd.f32 %v790, %v742
          %v792 = vadd.f32 %v791, %v743
          %v793 = vadd.f32 %v792, %v744
          %v794 = vadd.f32 %v793, %v745
          %v795 = vadd.f32 %v794, %v746
          %v796 = vadd.f32 %v795, %v747
          %v797 = vrot.slane %v796, 4
          %v798 = vadd.f32 %v796, %v797
          %v799 = vrot.slane %v798, 2
          %v800 = vadd.f32 %v798, %v799
          %v801 = vrot.slane %v800, 1
          %v802 = vadd.f32 %v800, %v801
          %v803 = vadd.f32 %v697, %v802
          %804 = vst [vmem:[#allocation3] sm:$0x1] %v803
          %s805 = smul.u32 %s22, 400
          %s806 = scalar_lea.vmem [#allocation6], %s805
          %807 = vst [vmem:[%s806] sm:$0xff] %v490
          %808 = vst [vmem:[%s806 + $0x8] sm:$0xff] %v493
          %809 = vst [vmem:[%s806 + $0x10] sm:$0xff] %v496
          %810 = vst [vmem:[%s806 + $0x18] sm:$0xff] %v499
          %811 = vst [vmem:[%s806 + $0x20] sm:$0xff] %v502
          %812 = vst [vmem:[%s806 + $0x28] sm:$0xff] %v505
          %813 = vst [vmem:[%s806 + $0x30] sm:$0xff] %v508
          %814 = vst [vmem:[%s806 + $0x38] sm:$0xff] %v511
          %815 = vst [vmem:[%s806 + $0x40] sm:$0xff] %v514
          %816 = vst [vmem:[%s806 + $0x48] sm:$0xff] %v517
          %817 = vst [vmem:[%s806 + $0x50] sm:$0xff] %v520
          %818 = vst [vmem:[%s806 + $0x58] sm:$0xff] %v523
          %819 = vst [vmem:[%s806 + $0x60] sm:$0xff] %v526
          %820 = vst [vmem:[%s806 + $0x68] sm:$0xff] %v529
          %821 = vst [vmem:[%s806 + $0x70] sm:$0xff] %v532
          %822 = vst [vmem:[%s806 + $0x78] sm:$0xff] %v535
          %823 = vst [vmem:[%s806 + $0x80] sm:$0xff] %v538
          %824 = vst [vmem:[%s806 + $0x88] sm:$0xff] %v541
          %825 = vst [vmem:[%s806 + $0x90] sm:$0xff] %v544
          %826 = vst [vmem:[%s806 + $0x98] sm:$0xff] %v547
          %827 = vst [vmem:[%s806 + $0xa0] sm:$0xff] %v550
          %828 = vst [vmem:[%s806 + $0xa8] sm:$0xff] %v553
          %829 = vst [vmem:[%s806 + $0xb0] sm:$0xff] %v556
          %830 = vst [vmem:[%s806 + $0xb8] sm:$0xff] %v559
          %831 = vst [vmem:[%s806 + $0xc0] sm:$0xff] %v562
          %832 = vst [vmem:[%s806 + $0xc8] sm:$0xff] %v565
          %833 = vst [vmem:[%s806 + $0xd0] sm:$0xff] %v568
          %834 = vst [vmem:[%s806 + $0xd8] sm:$0xff] %v571
          %835 = vst [vmem:[%s806 + $0xe0] sm:$0xff] %v574
          %836 = vst [vmem:[%s806 + $0xe8] sm:$0xff] %v577
          %837 = vst [vmem:[%s806 + $0xf0] sm:$0xff] %v580
          %838 = vst [vmem:[%s806 + $0xf8] sm:$0xff] %v583
          %839 = vst [vmem:[%s806 + $0x100] sm:$0xff] %v586
          %840 = vst [vmem:[%s806 + $0x108] sm:$0xff] %v589
          %841 = vst [vmem:[%s806 + $0x110] sm:$0xff] %v592
          %842 = vst [vmem:[%s806 + $0x118] sm:$0xff] %v595
          %843 = vst [vmem:[%s806 + $0x120] sm:$0xff] %v598
          %844 = vst [vmem:[%s806 + $0x128] sm:$0xff] %v601
          %845 = vst [vmem:[%s806 + $0x130] sm:$0xff] %v604
          %846 = vst [vmem:[%s806 + $0x138] sm:$0xff] %v607
          %847 = vst [vmem:[%s806 + $0x140] sm:$0xff] %v610
          %848 = vst [vmem:[%s806 + $0x148] sm:$0xff] %v613
          %849 = vst [vmem:[%s806 + $0x150] sm:$0xff] %v616
          %850 = vst [vmem:[%s806 + $0x158] sm:$0xff] %v619
          %851 = vst [vmem:[%s806 + $0x160] sm:$0xff] %v622
          %852 = vst [vmem:[%s806 + $0x168] sm:$0xff] %v625
          %853 = vst [vmem:[%s806 + $0x170] sm:$0xff] %v628
          %854 = vst [vmem:[%s806 + $0x178] sm:$0xff] %v631
          %855 = vst [vmem:[%s806 + $0x180] sm:$0xff] %v634
          %856 = vst [vmem:[%s806 + $0x188] sm:$0xff] %v637
        $region40: #{tpu_custom_call.1} parent=31 // pred_fallthru
          _
        // Predicated region
        $region41: #{tpu_custom_call.1} parent=31 // pred_check
          _
        $region42: #{tpu_custom_call.1} parent=31 // pred_check_branch
          %858 = sbr.rel (%p203) target = $region44
        $region43: #{tpu_custom_call.1} parent=31 // pred_region
          %v859 = vld [vmem:[#allocation2] sm:$0x1]
          %v860 = vmul.f32 %v859, 0.0025510204
          %v861 = vld [vmem:[#allocation3] sm:$0x1]
          %v862 = vmul.f32 %v861, 0.0025510204
          %v863 = vmul.f32 %v860, %v860
          %v864 = vsub.f32 %v862, %v863
          %v865 = vmax.f32 %v864, 0.0
          %v866 = vld [vmem:[%s2] sm:$0x1]
          %v867 = vadd.f32 %v865, 1e-05
          %v868 = vrsqrt.pop %v867
          %v869 = vmul.f32 %v868, %v867
          %v870 = vmul.f32 %v869, %v868
          %v871 = vmul.f32 0.5, %v870
          %v872 = vsub.f32 1.5, %v871
          %v873 = vmul.f32 %v868, %v872
          %vm874 = vweird.f32 %v867
          %vm875 = vweird.f32 %v868
          %vm876 = vmor %vm874, %vm875
          %v877 = vsel %vm876, %v868, %v873
          %v878 = vmul.f32 %v866, %v877
          %879 = vst [vmem:[#allocation4] sm:$0x1] %v878
          %v880 = vld [vmem:[%s2 + $0x1] sm:$0x1]
          %v881 = vmul.f32 %v860, %v878
          %v882 = vsub.f32 %v880, %v881
          %883 = vst [vmem:[#allocation5] sm:$0x1] %v882
        $region44: #{tpu_custom_call.1} parent=31 // pred_fallthru
          _
        %p884 = scmp.eq.s32.totalorder %s21, 1
        // Predicated region
        $region45: #{tpu_custom_call.1} parent=31 // pred_check
          %p885 = pneg %p884
        $region46: #{tpu_custom_call.1} parent=31 // pred_check_branch
          %887 = sbr.rel (%p885) target = $region48
        $region47: #{tpu_custom_call.1} parent=31 // pred_region
          %s888 = smul.u32 %s22, 400
          %s889 = scalar_lea.vmem [#allocation6], %s888
          %v890 = vld [vmem:[%s889] sm:$0xff]
          %v891 = vld [vmem:[%s889 + $0x8] sm:$0xff]
          %v892 = vld [vmem:[%s889 + $0x10] sm:$0xff]
          %v893 = vld [vmem:[%s889 + $0x18] sm:$0xff]
          %v894 = vld [vmem:[%s889 + $0x20] sm:$0xff]
          %v895 = vld [vmem:[%s889 + $0x28] sm:$0xff]
          %v896 = vld [vmem:[%s889 + $0x30] sm:$0xff]
          %v897 = vld [vmem:[%s889 + $0x38] sm:$0xff]
          %v898 = vld [vmem:[%s889 + $0x40] sm:$0xff]
          %v899 = vld [vmem:[%s889 + $0x48] sm:$0xff]
          %v900 = vld [vmem:[%s889 + $0x50] sm:$0xff]
          %v901 = vld [vmem:[%s889 + $0x58] sm:$0xff]
          %v902 = vld [vmem:[%s889 + $0x60] sm:$0xff]
          %v903 = vld [vmem:[%s889 + $0x68] sm:$0xff]
          %v904 = vld [vmem:[%s889 + $0x70] sm:$0xff]
          %v905 = vld [vmem:[%s889 + $0x78] sm:$0xff]
          %v906 = vld [vmem:[%s889 + $0x80] sm:$0xff]
          %v907 = vld [vmem:[%s889 + $0x88] sm:$0xff]
          %v908 = vld [vmem:[%s889 + $0x90] sm:$0xff]
          %v909 = vld [vmem:[%s889 + $0x98] sm:$0xff]
          %v910 = vld [vmem:[%s889 + $0xa0] sm:$0xff]
          %v911 = vld [vmem:[%s889 + $0xa8] sm:$0xff]
          %v912 = vld [vmem:[%s889 + $0xb0] sm:$0xff]
          %v913 = vld [vmem:[%s889 + $0xb8] sm:$0xff]
          %v914 = vld [vmem:[%s889 + $0xc0] sm:$0xff]
          %v915 = vld [vmem:[%s889 + $0xc8] sm:$0xff]
          %v916 = vld [vmem:[%s889 + $0xd0] sm:$0xff]
          %v917 = vld [vmem:[%s889 + $0xd8] sm:$0xff]
          %v918 = vld [vmem:[%s889 + $0xe0] sm:$0xff]
          %v919 = vld [vmem:[%s889 + $0xe8] sm:$0xff]
          %v920 = vld [vmem:[%s889 + $0xf0] sm:$0xff]
          %v921 = vld [vmem:[%s889 + $0xf8] sm:$0xff]
          %v922 = vld [vmem:[%s889 + $0x100] sm:$0xff]
          %v923 = vld [vmem:[%s889 + $0x108] sm:$0xff]
          %v924 = vld [vmem:[%s889 + $0x110] sm:$0xff]
          %v925 = vld [vmem:[%s889 + $0x118] sm:$0xff]
          %v926 = vld [vmem:[%s889 + $0x120] sm:$0xff]
          %v927 = vld [vmem:[%s889 + $0x128] sm:$0xff]
          %v928 = vld [vmem:[%s889 + $0x130] sm:$0xff]
          %v929 = vld [vmem:[%s889 + $0x138] sm:$0xff]
          %v930 = vld [vmem:[%s889 + $0x140] sm:$0xff]
          %v931 = vld [vmem:[%s889 + $0x148] sm:$0xff]
          %v932 = vld [vmem:[%s889 + $0x150] sm:$0xff]
          %v933 = vld [vmem:[%s889 + $0x158] sm:$0xff]
          %v934 = vld [vmem:[%s889 + $0x160] sm:$0xff]
          %v935 = vld [vmem:[%s889 + $0x168] sm:$0xff]
          %v936 = vld [vmem:[%s889 + $0x170] sm:$0xff]
          %v937 = vld [vmem:[%s889 + $0x178] sm:$0xff]
          %v938 = vld [vmem:[%s889 + $0x180] sm:$0xff]
          %v939 = vld [vmem:[%s889 + $0x188] sm:$0xff]
          %v940 = vld [vmem:[#allocation4] sm:$0x1]
          %v942 = vperm.slane %v940, 0
          %v944 = vmul.f32 %v890, %v942
          %v945 = vmul.f32 %v891, %v942
          %v946 = vmul.f32 %v892, %v942
          %v947 = vmul.f32 %v893, %v942
          %v948 = vmul.f32 %v894, %v942
          %v949 = vmul.f32 %v895, %v942
          %v950 = vmul.f32 %v896, %v942
          %v951 = vmul.f32 %v897, %v942
          %v952 = vmul.f32 %v898, %v942
          %v953 = vmul.f32 %v899, %v942
          %v954 = vmul.f32 %v900, %v942
          %v955 = vmul.f32 %v901, %v942
          %v956 = vmul.f32 %v902, %v942
          %v957 = vmul.f32 %v903, %v942
          %v958 = vmul.f32 %v904, %v942
          %v959 = vmul.f32 %v905, %v942
          %v960 = vmul.f32 %v906, %v942
          %v961 = vmul.f32 %v907, %v942
          %v962 = vmul.f32 %v908, %v942
          %v963 = vmul.f32 %v909, %v942
          %v964 = vmul.f32 %v910, %v942
          %v965 = vmul.f32 %v911, %v942
          %v966 = vmul.f32 %v912, %v942
          %v967 = vmul.f32 %v913, %v942
          %v968 = vmul.f32 %v914, %v942
          %v969 = vmul.f32 %v915, %v942
          %v970 = vmul.f32 %v916, %v942
          %v971 = vmul.f32 %v917, %v942
          %v972 = vmul.f32 %v918, %v942
          %v973 = vmul.f32 %v919, %v942
          %v974 = vmul.f32 %v920, %v942
          %v975 = vmul.f32 %v921, %v942
          %v976 = vmul.f32 %v922, %v942
          %v977 = vmul.f32 %v923, %v942
          %v978 = vmul.f32 %v924, %v942
          %v979 = vmul.f32 %v925, %v942
          %v980 = vmul.f32 %v926, %v942
          %v981 = vmul.f32 %v927, %v942
          %v982 = vmul.f32 %v928, %v942
          %v983 = vmul.f32 %v929, %v942
          %v984 = vmul.f32 %v930, %v942
          %v985 = vmul.f32 %v931, %v942
          %v986 = vmul.f32 %v932, %v942
          %v987 = vmul.f32 %v933, %v942
          %v988 = vmul.f32 %v934, %v942
          %v989 = vmul.f32 %v935, %v942
          %v990 = vmul.f32 %v936, %v942
          %v991 = vmul.f32 %v937, %v942
          %v992 = vmul.f32 %v938, %v942
          %v993 = vmul.f32 %v939, %v942
          %v994 = vld [vmem:[#allocation5] sm:$0x1]
          %v996 = vperm.slane %v994, 0
          %v998 = vadd.f32 %v944, %v996
          %v999 = vadd.f32 %v945, %v996
          %v1000 = vadd.f32 %v946, %v996
          %v1001 = vadd.f32 %v947, %v996
          %v1002 = vadd.f32 %v948, %v996
          %v1003 = vadd.f32 %v949, %v996
          %v1004 = vadd.f32 %v950, %v996
          %v1005 = vadd.f32 %v951, %v996
          %v1006 = vadd.f32 %v952, %v996
          %v1007 = vadd.f32 %v953, %v996
          %v1008 = vadd.f32 %v954, %v996
          %v1009 = vadd.f32 %v955, %v996
          %v1010 = vadd.f32 %v956, %v996
          %v1011 = vadd.f32 %v957, %v996
          %v1012 = vadd.f32 %v958, %v996
          %v1013 = vadd.f32 %v959, %v996
          %v1014 = vadd.f32 %v960, %v996
          %v1015 = vadd.f32 %v961, %v996
          %v1016 = vadd.f32 %v962, %v996
          %v1017 = vadd.f32 %v963, %v996
          %v1018 = vadd.f32 %v964, %v996
          %v1019 = vadd.f32 %v965, %v996
          %v1020 = vadd.f32 %v966, %v996
          %v1021 = vadd.f32 %v967, %v996
          %v1022 = vadd.f32 %v968, %v996
          %v1023 = vadd.f32 %v969, %v996
          %v1024 = vadd.f32 %v970, %v996
          %v1025 = vadd.f32 %v971, %v996
          %v1026 = vadd.f32 %v972, %v996
          %v1027 = vadd.f32 %v973, %v996
          %v1028 = vadd.f32 %v974, %v996
          %v1029 = vadd.f32 %v975, %v996
          %v1030 = vadd.f32 %v976, %v996
          %v1031 = vadd.f32 %v977, %v996
          %v1032 = vadd.f32 %v978, %v996
          %v1033 = vadd.f32 %v979, %v996
          %v1034 = vadd.f32 %v980, %v996
          %v1035 = vadd.f32 %v981, %v996
          %v1036 = vadd.f32 %v982, %v996
          %v1037 = vadd.f32 %v983, %v996
          %v1038 = vadd.f32 %v984, %v996
          %v1039 = vadd.f32 %v985, %v996
          %v1040 = vadd.f32 %v986, %v996
          %v1041 = vadd.f32 %v987, %v996
          %v1042 = vadd.f32 %v988, %v996
          %v1043 = vadd.f32 %v989, %v996
          %v1044 = vadd.f32 %v990, %v996
          %v1045 = vadd.f32 %v991, %v996
          %v1046 = vadd.f32 %v992, %v996
          %v1047 = vadd.f32 %v993, %v996
          %v1048 = vmax.f32 %v998, 0.0
          %v1049 = vmax.f32 %v999, 0.0
          %v1050 = vmax.f32 %v1000, 0.0
          %v1051 = vmax.f32 %v1001, 0.0
          %v1052 = vmax.f32 %v1002, 0.0
          %v1053 = vmax.f32 %v1003, 0.0
          %v1054 = vmax.f32 %v1004, 0.0
          %v1055 = vmax.f32 %v1005, 0.0
          %v1056 = vmax.f32 %v1006, 0.0
          %v1057 = vmax.f32 %v1007, 0.0
          %v1058 = vmax.f32 %v1008, 0.0
          %v1059 = vmax.f32 %v1009, 0.0
          %v1060 = vmax.f32 %v1010, 0.0
          %v1061 = vmax.f32 %v1011, 0.0
          %v1062 = vmax.f32 %v1012, 0.0
          %v1063 = vmax.f32 %v1013, 0.0
          %v1064 = vmax.f32 %v1014, 0.0
          %v1065 = vmax.f32 %v1015, 0.0
          %v1066 = vmax.f32 %v1016, 0.0
          %v1067 = vmax.f32 %v1017, 0.0
          %v1068 = vmax.f32 %v1018, 0.0
          %v1069 = vmax.f32 %v1019, 0.0
          %v1070 = vmax.f32 %v1020, 0.0
          %v1071 = vmax.f32 %v1021, 0.0
          %v1072 = vmax.f32 %v1022, 0.0
          %v1073 = vmax.f32 %v1023, 0.0
          %v1074 = vmax.f32 %v1024, 0.0
          %v1075 = vmax.f32 %v1025, 0.0
          %v1076 = vmax.f32 %v1026, 0.0
          %v1077 = vmax.f32 %v1027, 0.0
          %v1078 = vmax.f32 %v1028, 0.0
          %v1079 = vmax.f32 %v1029, 0.0
          %v1080 = vmax.f32 %v1030, 0.0
          %v1081 = vmax.f32 %v1031, 0.0
          %v1082 = vmax.f32 %v1032, 0.0
          %v1083 = vmax.f32 %v1033, 0.0
          %v1084 = vmax.f32 %v1034, 0.0
          %v1085 = vmax.f32 %v1035, 0.0
          %v1086 = vmax.f32 %v1036, 0.0
          %v1087 = vmax.f32 %v1037, 0.0
          %v1088 = vmax.f32 %v1038, 0.0
          %v1089 = vmax.f32 %v1039, 0.0
          %v1090 = vmax.f32 %v1040, 0.0
          %v1091 = vmax.f32 %v1041, 0.0
          %v1092 = vmax.f32 %v1042, 0.0
          %v1093 = vmax.f32 %v1043, 0.0
          %v1094 = vmax.f32 %v1044, 0.0
          %v1095 = vmax.f32 %v1045, 0.0
          %v1096 = vmax.f32 %v1046, 0.0
          %v1097 = vmax.f32 %v1047, 0.0
          %1098 = vst [vmem:[%s188] sm:$0xff] %v1048
          %1099 = vst [vmem:[%s188 + $0x8] sm:$0xff] %v1049
          %1100 = vst [vmem:[%s188 + $0x10] sm:$0xff] %v1050
          %1101 = vst [vmem:[%s188 + $0x18] sm:$0xff] %v1051
          %1102 = vst [vmem:[%s188 + $0x20] sm:$0xff] %v1052
          %1103 = vst [vmem:[%s188 + $0x28] sm:$0xff] %v1053
          %1104 = vst [vmem:[%s188 + $0x30] sm:$0xff] %v1054
          %1105 = vst [vmem:[%s188 + $0x38] sm:$0xff] %v1055
          %1106 = vst [vmem:[%s188 + $0x40] sm:$0xff] %v1056
          %1107 = vst [vmem:[%s188 + $0x48] sm:$0xff] %v1057
          %1108 = vst [vmem:[%s188 + $0x50] sm:$0xff] %v1058
          %1109 = vst [vmem:[%s188 + $0x58] sm:$0xff] %v1059
          %1110 = vst [vmem:[%s188 + $0x60] sm:$0xff] %v1060
          %1111 = vst [vmem:[%s188 + $0x68] sm:$0xff] %v1061
          %1112 = vst [vmem:[%s188 + $0x70] sm:$0xff] %v1062
          %1113 = vst [vmem:[%s188 + $0x78] sm:$0xff] %v1063
          %1114 = vst [vmem:[%s188 + $0x80] sm:$0xff] %v1064
          %1115 = vst [vmem:[%s188 + $0x88] sm:$0xff] %v1065
          %1116 = vst [vmem:[%s188 + $0x90] sm:$0xff] %v1066
          %1117 = vst [vmem:[%s188 + $0x98] sm:$0xff] %v1067
          %1118 = vst [vmem:[%s188 + $0xa0] sm:$0xff] %v1068
          %1119 = vst [vmem:[%s188 + $0xa8] sm:$0xff] %v1069
          %1120 = vst [vmem:[%s188 + $0xb0] sm:$0xff] %v1070
          %1121 = vst [vmem:[%s188 + $0xb8] sm:$0xff] %v1071
          %1122 = vst [vmem:[%s188 + $0xc0] sm:$0xff] %v1072
          %1123 = vst [vmem:[%s188 + $0xc8] sm:$0xff] %v1073
          %1124 = vst [vmem:[%s188 + $0xd0] sm:$0xff] %v1074
          %1125 = vst [vmem:[%s188 + $0xd8] sm:$0xff] %v1075
          %1126 = vst [vmem:[%s188 + $0xe0] sm:$0xff] %v1076
          %1127 = vst [vmem:[%s188 + $0xe8] sm:$0xff] %v1077
          %1128 = vst [vmem:[%s188 + $0xf0] sm:$0xff] %v1078
          %1129 = vst [vmem:[%s188 + $0xf8] sm:$0xff] %v1079
          %1130 = vst [vmem:[%s188 + $0x100] sm:$0xff] %v1080
          %1131 = vst [vmem:[%s188 + $0x108] sm:$0xff] %v1081
          %1132 = vst [vmem:[%s188 + $0x110] sm:$0xff] %v1082
          %1133 = vst [vmem:[%s188 + $0x118] sm:$0xff] %v1083
          %1134 = vst [vmem:[%s188 + $0x120] sm:$0xff] %v1084
          %1135 = vst [vmem:[%s188 + $0x128] sm:$0xff] %v1085
          %1136 = vst [vmem:[%s188 + $0x130] sm:$0xff] %v1086
          %1137 = vst [vmem:[%s188 + $0x138] sm:$0xff] %v1087
          %1138 = vst [vmem:[%s188 + $0x140] sm:$0xff] %v1088
          %1139 = vst [vmem:[%s188 + $0x148] sm:$0xff] %v1089
          %1140 = vst [vmem:[%s188 + $0x150] sm:$0xff] %v1090
          %1141 = vst [vmem:[%s188 + $0x158] sm:$0xff] %v1091
          %1142 = vst [vmem:[%s188 + $0x160] sm:$0xff] %v1092
          %1143 = vst [vmem:[%s188 + $0x168] sm:$0xff] %v1093
          %1144 = vst [vmem:[%s188 + $0x170] sm:$0xff] %v1094
          %1145 = vst [vmem:[%s188 + $0x178] sm:$0xff] %v1095
          %1146 = vst [vmem:[%s188 + $0x180] sm:$0xff] %v1096
          %1147 = vst [vmem:[%s188 + $0x188] sm:$0xff] %v1097
        $region48: #{tpu_custom_call.1} parent=31 // pred_fallthru
          _
        %s1148 = sand.u32 %s111, 1
        %s1149 = scalar_lea.sflag [#allocation8], %s1148
        %s1150 = sand.u32 %s111, 1
        %s1151 = smul.addr %s1150, 400
        %s1152 = scalar_lea.vmem [#allocation7], %s1151
        // Predicated region
        $region49: #{tpu_custom_call.1} parent=31 // pred_check
          %p1153 = pneg %p121
        $region50: #{tpu_custom_call.1} parent=31 // pred_check_branch
          %1155 = sbr.rel (%p1153) target = $region52
        $region51: #{tpu_custom_call.1} parent=31 // pred_region
          %s1156 = smul.u32 %s22, %s21
          %s1157 = smul.u32 50, %s1156
          %1159 = vsyncadd %s1149, 0
          %s1160 = smul.addr %s1157, 8
          %s1161 = scalar_lea.hbm %s3, %s1160
          %s1162 = sshll.u32 %s1152, 4
          %s1163 = int_to_ptr.vmem [resolvable:$true] %s1162
          %s1164 = sshll.u32 %s1161, 4
          %s1165 = int_to_ptr.hbm [resolvable:$true] %s1164
          %1170 = dma.vmem_to_hbm [thread:$0]  %s1163, 6400, %s1165, %s1149, 128, 128, 8
        $region52: #{tpu_custom_call.1} parent=31 // pred_fallthru
          _
      $region32: #{tpu_custom_call.1} parent=5 // pred_fallthru
        _
      %p1171 = scmp.le.s32.totalorder 2, %s12
      // Predicated region
      $region53: #{tpu_custom_call.1} parent=5 // pred_check
        %p1172 = pneg %p1171
      $region54: #{tpu_custom_call.1} parent=5 // pred_check_branch
        %1174 = sbr.rel (%p1172) target = $region56
      $region55: #{tpu_custom_call.1} parent=5 // pred_region
        %s1175 = ssub.s32 %s12, 2
        // Predicated region
        $region57: #{tpu_custom_call.1} parent=55 // pred_check
          %p1176 = pneg %p127
        $region58: #{tpu_custom_call.1} parent=55 // pred_check_branch
          %1178 = sbr.rel (%p1176) target = $region60
        $region59: #{tpu_custom_call.1} parent=55 // pred_region
          %s1179 = sand.u32 %s112, 1
          %s1180 = scalar_lea.sflag [#allocation8], %s1179
          %s1181 = sand.u32 %s112, 1
          %s1182 = smul.addr %s1181, 400
          %s1183 = scalar_lea.vmem [#allocation7], %s1182
          %1185 = dma.done %s1180, 6400
        $region60: #{tpu_custom_call.1} parent=55 // pred_fallthru
          _
      $region56: #{tpu_custom_call.1} parent=5 // pred_fallthru
        _
    $region6: #{tpu_custom_call.1} parent=1 // loop_footer
      %s16 = sadd.s32 1, %s12
    $region7: #{tpu_custom_call.1} parent=1 // loop_footer_branch
      %11 = sbr.rel target = $region3
    $region8: #{tpu_custom_call.1} parent=1 // loop_exit
      _
    %1186 = vsyncpa [#allocation8], 1
    %s1187 = scalar_lea.sflag [#allocation8], 1
    %1188 = vsyncpa %s1187, 1

</llo_original>
